<compile_context>
chip_gen: v7x
topology: tpu7x:2x2x1
jax: 0.10.0
libtpu: 0.0.40
codegen_flags: <defaults>
</compile_context>

<pallas_src>
import jax
import jax.numpy as jnp
from jax.experimental import pallas as pl
from jax.experimental.pallas import tpu as pltpu


def nsp_head_kernel(x_ref, w_ref, b_ref, o_ref):
    # x_ref: [TB, H], w_ref: [H, 2], b_ref: [1, 2], o_ref: [TB, 2]
    y = jnp.dot(x_ref[...], w_ref[...], preferred_element_type=jnp.float32)
    o_ref[...] = (y + b_ref[...]).astype(o_ref.dtype)


def _sublane_rows(dtype):
    # Native sublane tile per dtype width: f32 -> 8, bf16 -> 16, int8/fp8 -> 32.
    return {4: 8, 2: 16, 1: 32}.get(jnp.dtype(dtype).itemsize, 8)


def _round_up(x, m):
    return -(-x // m) * m


def _pick_block_b(batch, hidden, dtype):
    """Rows of x per grid step."""
    sub = _sublane_rows(dtype)
    itemsize = jnp.dtype(dtype).itemsize
    # ~8 MiB of x per tile; double-buffered = 16 MiB, well under the 32 MiB
    # scoped-VMEM limit (and v7x's 64 MiB per-TC VMEM).
    budget_bytes = 8 * 1024 * 1024
    tb = budget_bytes // max(1, hidden * itemsize)
    tb = max(sub, (tb // sub) * sub)
    # Ensure >= 2 grid programs when the batch is big enough, so the
    # "parallel" axis actually shards across both v7x TensorCores.
    if batch >= 2 * sub:
        tb = min(tb, _round_up(_round_up(batch, 2) // 2, sub))
    # A block equal to the full batch dim is always a legal block shape.
    tb = min(tb, batch)
    return max(1, tb)


def bert_only_nsp_head(pooled_output, weight, bias, *, block_b=None):
    """seq_relationship_score = pooled_output @ weight.T + bias

    pooled_output: [B, H]
    weight:        [2, H]  (PyTorch nn.Linear convention)
    bias:          [2]
    returns:       [B, 2]
    """
    B, H = pooled_output.shape
    dtype = pooled_output.dtype
    if B == 0:
        return jnp.zeros((0, 2), dtype=dtype)

    sub = _sublane_rows(dtype)
    if block_b is not None:
        tb = min(max(sub, _round_up(block_b, sub)), B)
    else:
        tb = _pick_block_b(B, H, dtype)

    # One tiny [2,H]->[H,2] copy in the wrapper keeps the in-kernel contraction
    # a plain (row-major) MXU matmul with no transpose hazard.
    w_t = jnp.transpose(weight)          # [H, 2]
    b2d = bias.reshape(1, 2)

    grid = (pl.cdiv(B, tb),)             # partial last block handled by Pallas
    itemsize = jnp.dtype(dtype).itemsize
    cost = pl.CostEstimate(
        flops=4 * B * H,                 # 2 * B * 2 * H MACs
        transcendentals=0,
        bytes_accessed=B * H * itemsize
        + H * 2 * jnp.dtype(weight.dtype).itemsize
        + 2 * jnp.dtype(bias.dtype).itemsize
        + B * 2 * itemsize,
    )

    out = pl.pallas_call(
        nsp_head_kernel,
        out_shape=jax.ShapeDtypeStruct((B, 2), dtype),
        grid=grid,
        in_specs=[
            pl.BlockSpec((tb, H), lambda i: (i, 0)),   # x: streamed over batch
            pl.BlockSpec((H, 2), lambda i: (0, 0)),    # weight.T: grid-invariant
            pl.BlockSpec((1, 2), lambda i: (0, 0)),    # bias: grid-invariant
        ],
        out_specs=pl.BlockSpec((tb, 2), lambda i: (i, 0)),
        compiler_params=pltpu.CompilerParams(
            dimension_semantics=("parallel",),          # megacore sharding on v7x
            vmem_limit_bytes=32 * 1024 * 1024,
        ),
        cost_estimate=cost,
    )(pooled_output, w_t, b2d)

    return out


if __name__ == "__main__":
    key = jax.random.PRNGKey(0)
    k_x, k_w, k_b, k_x2, k_x3 = jax.random.split(key, 5)

    # --- Test 1: small shapes, auto tile selection ---
    batch, hidden_size = 8, 32
    pooled_output = jax.random.normal(k_x, (batch, hidden_size), dtype=jnp.float32)
    # nn.Linear(hidden_size, 2): weight [2, hidden_size], bias [2]
    weight = jax.random.normal(k_w, (2, hidden_size), dtype=jnp.float32) * 0.02
    bias = jax.random.normal(k_b, (2,), dtype=jnp.float32) * 0.02

    out = bert_only_nsp_head(pooled_output, weight, bias)
    out = jax.block_until_ready(out)
    ref = pooled_output @ weight.T + bias
    assert out.shape == (batch, 2)
    assert jnp.allclose(out, ref, atol=1e-5, rtol=1e-5)

    # --- Test 2: ragged batch (B not divisible by tb) -> partial last block,
    #             multi-step grid exercising the pipelined path, no padding.
    batch2, hidden2 = 20, 128
    x2 = jax.random.normal(k_x2, (batch2, hidden2), dtype=jnp.float32)
    w2 = jax.random.normal(k_w, (2, hidden2), dtype=jnp.float32) * 0.02
    b2 = jax.random.normal(k_b, (2,), dtype=jnp.float32) * 0.02

    out2 = bert_only_nsp_head(x2, w2, b2, block_b=8)   # grid = (3,), last block = 4 rows
    out2 = jax.block_until_ready(out2)
    ref2 = x2 @ w2.T + b2
    assert out2.shape == (batch2, 2)
    assert jnp.allclose(out2, ref2, atol=1e-5, rtol=1e-5)

    # --- Test 3: bf16 inputs exercise the dtype-aware (16-row) sublane tiling
    #             and the >=2-program split of the batch grid.
    batch3, hidden3 = 48, 128
    x3 = jax.random.normal(k_x3, (batch3, hidden3), dtype=jnp.float32).astype(jnp.bfloat16)
    w3 = (jax.random.normal(k_w, (2, hidden3), dtype=jnp.float32) * 0.02).astype(jnp.bfloat16)
    b3 = (jax.random.normal(k_b, (2,), dtype=jnp.float32) * 0.02).astype(jnp.bfloat16)

    out3 = bert_only_nsp_head(x3, w3, b3)              # tb = 32 -> grid = (2,)
    out3 = jax.block_until_ready(out3)
    ref3 = (x3.astype(jnp.float32) @ w3.astype(jnp.float32).T
            + b3.astype(jnp.float32)).astype(jnp.bfloat16)
    assert out3.shape == (batch3, 2)
    assert jnp.allclose(out3.astype(jnp.float32), ref3.astype(jnp.float32),
                        atol=2e-2, rtol=2e-2)

    print("KERNEL_OK")
</pallas_src>

<mosaic_0001>
module attributes {stable_mosaic.version = 11 : i64} {
  func.func @nsp_head_kernel(%arg0: i32, %arg1: memref<8x32xf32, #tpu.memory_space<vmem>>, %arg2: memref<32x2xf32, #tpu.memory_space<vmem>>, %arg3: memref<1x2xf32, #tpu.memory_space<vmem>>, %arg4: memref<8x2xf32, #tpu.memory_space<vmem>>) attributes {dimension_semantics = [#tpu.dimension_semantics<parallel>], iteration_bounds = array<i64: 1>, scalar_prefetch = 0 : i64, scratch_operands = 0 : i64, tpu.core_type = #tpu.core_type<tc>, window_params = [{transform_indices = @transform_0, window_bounds = array<i64: 8, 32>}, {pipeline_mode = #tpu.pipeline_mode<synchronous>, transform_indices = @transform_1, window_bounds = array<i64: 32, 2>}, {pipeline_mode = #tpu.pipeline_mode<synchronous>, transform_indices = @transform_2, window_bounds = array<i64: 1, 2>}, {transform_indices = @transform_3, window_bounds = array<i64: 8, 2>}]} {
    %c0 = arith.constant 0 : index
    %c0_0 = arith.constant 0 : index
    %0 = vector.load %arg1[%c0, %c0_0] : memref<8x32xf32, #tpu.memory_space<vmem>>, vector<8x32xf32>
    %c0_1 = arith.constant 0 : index
    %c0_2 = arith.constant 0 : index
    %1 = vector.load %arg2[%c0_1, %c0_2] : memref<32x2xf32, #tpu.memory_space<vmem>>, vector<32x2xf32>
    %cst = arith.constant dense<0.000000e+00> : vector<8x2xf32>
    %2 = tpu.matmul %0, %1, %cst {dimension_numbers = #tpu.dot_dimension_numbers<[1], [0], [0], [1], [0, 0, 1, 1], [], []>} : vector<8x32xf32>, vector<32x2xf32>, vector<8x2xf32> -> vector<8x2xf32>
    %c0_3 = arith.constant 0 : index
    %c0_4 = arith.constant 0 : index
    %3 = vector.load %arg3[%c0_3, %c0_4] : memref<1x2xf32, #tpu.memory_space<vmem>>, vector<1x2xf32>
    %4 = vector.broadcast %3 : vector<1x2xf32> to vector<8x2xf32>
    %5 = arith.addf %2, %4 : vector<8x2xf32>
    %c0_5 = arith.constant 0 : index
    %c0_6 = arith.constant 0 : index
    %6 = vector.load %arg4[%c0_5, %c0_6] : memref<8x2xf32, #tpu.memory_space<vmem>>, vector<8x2xf32>
    tpu.vector_store %arg4[%c0_5, %c0_6], %5 {strides = array<i32>} : memref<8x2xf32, #tpu.memory_space<vmem>>, vector<8x2xf32>,
    return
  }
  func.func @transform_0(%arg0: i32) -> (i32, i32) {
    %c0_i32 = arith.constant 0 : i32
    %c0_i32_0 = arith.constant 0 : i32
    return %arg0, %c0_i32 : i32, i32
  }
  func.func @transform_1(%arg0: i32) -> (i32, i32) {
    %c0_i32 = arith.constant 0 : i32
    %c0_i32_0 = arith.constant 0 : i32
    %c0_i32_1 = arith.constant 0 : i32
    return %c0_i32, %c0_i32_0 : i32, i32
  }
  func.func @transform_2(%arg0: i32) -> (i32, i32) {
    %c0_i32 = arith.constant 0 : i32
    %c0_i32_0 = arith.constant 0 : i32
    %c0_i32_1 = arith.constant 0 : i32
    return %c0_i32, %c0_i32_0 : i32, i32
  }
  func.func @transform_3(%arg0: i32) -> (i32, i32) {
    %c0_i32 = arith.constant 0 : i32
    %c0_i32_0 = arith.constant 0 : i32
    return %arg0, %c0_i32 : i32, i32
  }
}

</mosaic_0001>

<llo_original>
// kernel: tpu_custom_call.1
$region0: #{tpu_custom_call.1}
  #allocation0 [shape = 'u32[]', space=smem, size = 0x4, offset = 0x4, fixed_abs, tag = 'smem constant byte address 0x4 - core index']
  #allocation1 [shape = 'u32[144,128]{1,0:T(1,128)}', space=vmem, size = 0x12000, scoped, tag = 'internal scratch']
  %s0 = inlined_call_operand.vmem [shape: f32[8,32], index: 0, kind: input, shape index: {}]
  %s1 = inlined_call_operand.vmem [shape: f32[32,2], index: 1, kind: input, shape index: {}]
  %s2 = inlined_call_operand.vmem [shape: f32[1,2], index: 2, kind: input, shape index: {}]
  %s3 = inlined_call_operand.vmem [shape: f32[8,2], index: 3, kind: output, shape index: {}]
  %s4 = sld [smem:[#allocation0]]
  $region22: #{tpu_custom_call.1} parent=0
    _
  %s6 = ssub.s32 1, %s4
  %s7 = scalar_select 0, %s6, %s4
  // Predicated region
  $region2: #{tpu_custom_call.1} parent=0 // pred_check
    _
  $region3: #{tpu_custom_call.1} parent=0 // pred_check_branch
    %9 = sbr.rel (0) target = $region5
  $region4: #{tpu_custom_call.1} parent=0 // pred_region
    _
  $region5: #{tpu_custom_call.1} parent=0 // pred_fallthru
    _
  // Predicated region
  $region6: #{tpu_custom_call.1} parent=0 // pred_check
    _
  $region7: #{tpu_custom_call.1} parent=0 // pred_check_branch
    %11 = sbr.rel (0) target = $region9
  $region8: #{tpu_custom_call.1} parent=0 // pred_region
    _
  $region9: #{tpu_custom_call.1} parent=0 // pred_fallthru
    _
  // Predicated region
  $region10: #{tpu_custom_call.1} parent=0 // pred_check
    _
  $region11: #{tpu_custom_call.1} parent=0 // pred_check_branch
    %13 = sbr.rel (0) target = $region13
  $region12: #{tpu_custom_call.1} parent=0 // pred_region
    _
  $region13: #{tpu_custom_call.1} parent=0 // pred_fallthru
    _
  %v14 = vld [vmem:[%s0] sm:$0xff]
  %v15 = vld [vmem:[%s1] sm:$0xff]
  %v16 = vld [vmem:[%s1 + $0x8] sm:$0xff]
  %v17 = vld [vmem:[%s1 + $0x10] sm:$0xff]
  %v18 = vld [vmem:[%s1 + $0x18] sm:$0xff]
  %v19 = vld [vmem:[%s2] sm:$0x1]
  %v21 = vlaneseq
  %v22 = vshrl.u32 %v21, 7
  %v23 = vsub.s32 0, %v22
  %v24 = vrot.slane %v19, %v23
  %vm26 = vcmask 261120
  %v28 = vsel %vm26, %v14, 0
  %30 = vmatprep.subr.mxu0 0.0
  %31 = vmatpush1.msra.mxu0 %v15
  %32 = vmatprep.subr.mxu0 0.0
  %33 = vmatpush1.msra.mxu0 %v16
  %34 = vmatprep.subr.mxu0 0.0
  %35 = vmatpush1.msra.mxu0 %v17
  %36 = vmatprep.subr.mxu0 0.0
  %37 = vmatpush1.msra.mxu0 %v18
  %38 = vmatprep.subr.mxu0 0.0
  %39 = vmatpush1.msra.mxu0 0.0
  %40 = vmatprep.subr.mxu0 0.0
  %41 = vmatpush1.msra.mxu0 0.0
  %42 = vmatprep.subr.mxu0 0.0
  %43 = vmatpush1.msra.mxu0 0.0
  %44 = vmatprep.subr.mxu0 0.0
  %45 = vmatpush1.msra.mxu0 0.0
  %46 = vmatprep.subr.mxu0 0.0
  %47 = vmatpush1.msra.mxu0 0.0
  %48 = vmatprep.subr.mxu0 0.0
  %49 = vmatpush1.msra.mxu0 0.0
  %50 = vmatprep.subr.mxu0 0.0
  %51 = vmatpush1.msra.mxu0 0.0
  %52 = vmatprep.subr.mxu0 0.0
  %53 = vmatpush1.msra.mxu0 0.0
  %54 = vmatprep.subr.mxu0 0.0
  %55 = vmatpush1.msra.mxu0 0.0
  %56 = vmatprep.subr.mxu0 0.0
  %57 = vmatpush1.msra.mxu0 0.0
  %58 = vmatprep.subr.mxu0 0.0
  %59 = vmatpush1.msra.mxu0 0.0
  %60 = vmatprep.subr.mxu0 0.0
  %61 = vmatpush1.msra.mxu0 0.0
  %62 = vmatprep.subr.mxu0 0.0
  %63 = vmatpush1.msra.mxu0 0.0
  %64 = vmatprep.subr.mxu0 0.0
  %65 = vmatpush1.msra.mxu0 0.0
  %66 = vmatprep.subr.mxu0 0.0
  %67 = vmatpush1.msra.mxu0 0.0
  %68 = vmatprep.subr.mxu0 0.0
  %69 = vmatpush1.msra.mxu0 0.0
  %70 = vmatprep.subr.mxu0 0.0
  %71 = vmatpush1.msra.mxu0 0.0
  %72 = vmatprep.subr.mxu0 0.0
  %73 = vmatpush1.msra.mxu0 0.0
  %74 = vmatprep.subr.mxu0 0.0
  %75 = vmatpush1.msra.mxu0 0.0
  %76 = vmatprep.subr.mxu0 0.0
  %77 = vmatpush1.msra.mxu0 0.0
  %78 = vmatprep.subr.mxu0 0.0
  %79 = vmatpush1.msra.mxu0 0.0
  %80 = vmatprep.subr.mxu0 0.0
  %81 = vmatpush1.msra.mxu0 0.0
  %82 = vmatprep.subr.mxu0 0.0
  %83 = vmatpush1.msra.mxu0 0.0
  %84 = vmatprep.subr.mxu0 0.0
  %85 = vmatpush1.msra.mxu0 0.0
  %86 = vmatprep.subr.mxu0 0.0
  %87 = vmatpush1.msra.mxu0 0.0
  %88 = vmatprep.subr.mxu0 0.0
  %89 = vmatpush1.msra.mxu0 0.0
  %90 = vmatprep.subr.mxu0 0.0
  %91 = vmatpush1.msra.mxu0 0.0
  %92 = vmatprep.subr.mxu0 0.0
  %93 = vmatpush1.msra.mxu0 0.0
  %94 = vmatprep.mubr.f32.mxu0 0.0
  %95 = vmatmul.mubr.f32.gmra.mrb[0].mxu0 %v28
  %v96 = vpop.f32.mrb[0].mxu0
  %v97 = vadd.f32 %v24, %v96
  %v98 = vpop.f32.mrb[0].mxu0
  %99 = vdwg.mxu0
  %vm100 = vcmask 15360
  %101 = vst.msk [vmem:[%s3] sm:$0xff] %vm100, %v97
  // Predicated region
  $region14: #{tpu_custom_call.1} parent=0 // pred_check
    _
  $region15: #{tpu_custom_call.1} parent=0 // pred_check_branch
    %103 = sbr.rel (0) target = $region17
  $region16: #{tpu_custom_call.1} parent=0 // pred_region
    _
  $region17: #{tpu_custom_call.1} parent=0 // pred_fallthru
    _
  // Predicated region
  $region18: #{tpu_custom_call.1} parent=0 // pred_check
    _
  $region19: #{tpu_custom_call.1} parent=0 // pred_check_branch
    %105 = sbr.rel (0) target = $region21
  $region20: #{tpu_custom_call.1} parent=0 // pred_region
    _
  $region21: #{tpu_custom_call.1} parent=0 // pred_fallthru
    _

</llo_original>
